<compile_context>
chip_gen: v5e
topology: v5e:2x2
jax: 0.10.0
libtpu: 0.0.40
codegen_flags: <defaults>
</compile_context>

<pallas_src>
import functools

import jax
import jax.numpy as jnp
from jax.experimental import pallas as pl
from jax.experimental.pallas import tpu as pltpu


# ----------------------------------------------------------------------------
# Fused Pallas kernel
# ----------------------------------------------------------------------------

def _exact_gelu(x):
    # nn.GELU() default (approximate='none'): 0.5*x*(1+erf(x/sqrt(2)))
    return 0.5 * x * (1.0 + jax.lax.erf(x * 0.7071067811865475))


def _fused_forward_kernel(*refs, num_nodes, num_layers, with_gat):
    it = iter(refs)
    img = next(it)[...]                    # (n_items, Fv) f32
    txt = next(it)[...]                    # (n_items, Ft) f32
    wi_t = next(it)[...]                   # (Fv, half)   bf16
    bi = next(it)[...]                     # (1, half)    f32
    wt_t = next(it)[...]                   # (Ft, half)   bf16
    bt = next(it)[...]                     # (1, half)    f32
    ci = next(it)[...]                     # (1, n_items) int32
    if with_gat:
        dst_row = next(it)[...]            # (1, E) int32
        src_col = next(it)[...]            # (E, 1) int32
        layers = [tuple(next(it) for _ in range(3)) for _ in range(num_layers)]
    out_ref = next(it)

    bf16 = jnp.bfloat16
    f32 = jnp.float32

    # --- upscale_img / upsale_text + concat (bf16 matmuls, f32 accumulation) ----
    img_p = jnp.dot(img.astype(bf16), wi_t, preferred_element_type=f32) + bi
    txt_p = jnp.dot(txt.astype(bf16), wt_t, preferred_element_type=f32) + bt
    proj = jnp.concatenate([img_p, txt_p], axis=-1)           # (n_items, feat)

    # --- scatter into node matrix via one-hot matmul (kept f32 => exact) --------
    n_items = proj.shape[0]
    rows = jax.lax.broadcasted_iota(jnp.int32, (num_nodes, n_items), 0)
    scatter = (rows == ci).astype(f32)                        # P[r,i] = (ci[i] == r)
    node = jnp.dot(scatter, proj, preferred_element_type=f32) # (num_nodes, feat)
    node = _exact_gelu(node)

    if not with_gat:
        out_ref[...] = node
        return

    # --- dense adjacency with self loops (edge src -> dst => adj[dst, src]) -----
    num_edges = dst_row.shape[1]
    d_onehot = (jax.lax.broadcasted_iota(jnp.int32, (num_nodes, num_edges), 0)
                == dst_row).astype(f32)                       # (N, E)
    s_onehot = (jax.lax.broadcasted_iota(jnp.int32, (num_edges, num_nodes), 1)
                == src_col).astype(f32)                       # (E, N)
    cnt = jnp.dot(d_onehot, s_onehot, preferred_element_type=f32)
    eye = (jax.lax.broadcasted_iota(jnp.int32, (num_nodes, num_nodes), 0)
           == jax.lax.broadcasted_iota(jnp.int32, (num_nodes, num_nodes), 1))
    adj_mask = (cnt > 0.0) | eye                              # bool (N, N)

    # --- GAT stack (single-head GATConv per layer, dense formulation) -----------
    x = node
    for li, (w_t_r, v_att_r, b_r) in enumerate(layers):
        xb = x.astype(bf16)
        h = jnp.dot(xb, w_t_r[...], preferred_element_type=f32)    # (N, Fo)
        e = jnp.dot(xb, v_att_r[...], preferred_element_type=f32)  # (N, 2) [dst,src]
        z = e[:, 0:1] + e[:, 1:2].T                           # rank-1 broadcast (N, N)
        z = jnp.where(z > 0, z, 0.2 * z)                      # LeakyReLU(0.2)
        logits = jnp.where(adj_mask, z, -1e30)                # softmax stays in f32
        m = jnp.max(logits, axis=-1, keepdims=True)
        p = jnp.exp(logits - m)
        alpha = p * pl.reciprocal(jnp.sum(p, axis=-1, keepdims=True), approx=True)
        out = jnp.dot(alpha.astype(bf16), h.astype(bf16),
                      preferred_element_type=f32) + b_r[...]
        x = jnp.maximum(out, 0.0) if li < num_layers - 1 else out

    out_ref[...] = _exact_gelu(x)                             # outer GELU


# ----------------------------------------------------------------------------
# Parameter init (deterministic, synthetic) + host-side layout prep
# ----------------------------------------------------------------------------

def init_params(key, text_features_size, visual_feature_size, in_channels,
                hidden_channels, num_layers, out_channels, num_categories=2):
    in_channels = in_channels + in_channels % 2               # as in __init__
    half = in_channels // 2
    keys = jax.random.split(key, 4 + num_layers)

    def linear(k, fo, fi):
        kw, kb = jax.random.split(k)
        sc = 1.0 / (fi ** 0.5)
        return (jax.random.uniform(kw, (fo, fi), jnp.float32, -sc, sc),
                jax.random.uniform(kb, (fo,), jnp.float32, -sc, sc))

    w_img, b_img = linear(keys[0], half, visual_feature_size)
    w_txt, b_txt = linear(keys[1], half, text_features_size)
    # regression_angle / regression_distance exist in __init__ but are never used
    # in forward(); initialized only for parameter parity.
    w_ra, b_ra = linear(keys[2], num_categories, out_channels)
    w_rd, b_rd = linear(keys[3], num_categories, out_channels)

    dims = [in_channels] + [hidden_channels] * (num_layers - 1) + [out_channels]
    gat = []
    for li in range(num_layers):
        fi, fo = dims[li], dims[li + 1]
        kw, ka, kd = jax.random.split(keys[4 + li], 3)
        sc = 1.0 / (fi ** 0.5)
        gat.append(dict(
            w=jax.random.uniform(kw, (fo, fi), jnp.float32, -sc, sc),
            a_src=0.1 * jax.random.normal(ka, (1, fo), jnp.float32),
            a_dst=0.1 * jax.random.normal(kd, (1, fo), jnp.float32),
            b=jnp.zeros((fo,), jnp.float32)))
    return dict(w_img=w_img, b_img=b_img, w_txt=w_txt, b_txt=b_txt,
                w_ra=w_ra, b_ra=b_ra, w_rd=w_rd, b_rd=b_rd, gat=gat)


def prepare_params(params):
    """Host-side layout plumbing (done once): transpose weights to MXU-friendly
    (Fi, Fo), pre-cast to bf16, fold both attention vectors into one (Fi, 2)
    matrix (v = W^T a), reshape biases to (1, F) and keep them f32."""
    bf16 = jnp.bfloat16
    prep = dict(
        w_img_t=params['w_img'].T.astype(bf16), b_img=params['b_img'].reshape(1, -1),
        w_txt_t=params['w_txt'].T.astype(bf16), b_txt=params['b_txt'].reshape(1, -1))
    gat = []
    for layer in params['gat']:
        w_t = layer['w'].T                                    # (Fi, Fo) f32
        v_dst = w_t @ layer['a_dst'].reshape(-1, 1)           # (Fi, 1)
        v_src = w_t @ layer['a_src'].reshape(-1, 1)           # (Fi, 1)
        gat.append(dict(
            w_t=w_t.astype(bf16),
            v_att=jnp.concatenate([v_dst, v_src], axis=1).astype(bf16),  # (Fi, 2)
            b=layer['b'].reshape(1, -1)))
    prep['gat'] = gat
    return prep


# ----------------------------------------------------------------------------
# Forward wrapper (single pallas_call)
# ----------------------------------------------------------------------------

def _vmem():
    return pl.BlockSpec(memory_space=pltpu.MemorySpace.VMEM)


def graph_conv_forward(prep, image_features, text_features, content_indices, edges,
                       *, num_nodes):
    """num_nodes must be a static Python int (== max(content_indices) + 1) so no
    device->host sync is needed and the whole forward stays jit-able."""
    n_items = image_features.shape[0]
    num_layers = len(prep['gat'])
    with_gat = edges.shape[0] > 0
    feat = prep['w_img_t'].shape[1] + prep['w_txt_t'].shape[1]
    out_feat = prep['gat'][-1]['w_t'].shape[1] if with_gat else feat

    args = [image_features.astype(jnp.float32), text_features.astype(jnp.float32),
            prep['w_img_t'], prep['b_img'], prep['w_txt_t'], prep['b_txt'],
            content_indices.reshape(1, n_items).astype(jnp.int32)]
    if with_gat:
        num_edges = edges.shape[0]
        args += [edges[:, 1].reshape(1, num_edges).astype(jnp.int32),   # dst row
                 edges[:, 0].reshape(num_edges, 1).astype(jnp.int32)]   # src col
        for layer in prep['gat']:
            args += [layer['w_t'], layer['v_att'], layer['b']]

    kern = functools.partial(_fused_forward_kernel, num_nodes=num_nodes,
                             num_layers=num_layers, with_gat=with_gat)
    out = pl.pallas_call(
        kern,
        out_shape=jax.ShapeDtypeStruct((num_nodes, out_feat), jnp.float32),
        in_specs=[_vmem()] * len(args),
        out_specs=_vmem(),
        compiler_params=pltpu.CompilerParams(vmem_limit_bytes=32 * 1024 * 1024),
    )(*args)
    # TODO(synk): torch_geometric's GAT class is external to the reference source;
    # approximated as a stack of single-head GATConv layers (ReLU between layers,
    # dropout omitted / eval mode).
    return {'image_features': out, 'regressed_features': out}


# ----------------------------------------------------------------------------
# Pure-JAX f32 reference (for correctness check only)
# ----------------------------------------------------------------------------

def graph_conv_forward_ref(params, image_features, text_features, content_indices,
                           edges, *, num_nodes):
    img_p = image_features @ params['w_img'].T + params['b_img']
    txt_p = text_features @ params['w_txt'].T + params['b_txt']
    inp = jnp.concatenate([img_p, txt_p], axis=-1)
    node = jnp.zeros((num_nodes, inp.shape[1]), jnp.float32)
    node = node.at[content_indices].set(inp)
    node = _exact_gelu(node)
    if edges.shape[0] == 0:
        return node
    adj = jnp.zeros((num_nodes, num_nodes), bool)
    adj = adj.at[edges[:, 1], edges[:, 0]].set(True) | jnp.eye(num_nodes, dtype=bool)
    x = node
    nl = len(params['gat'])
    for li, layer in enumerate(params['gat']):
        h = x @ layer['w'].T
        e_dst = h @ layer['a_dst'].reshape(-1)
        e_src = h @ layer['a_src'].reshape(-1)
        z = e_dst[:, None] + e_src[None, :]
        z = jnp.where(z > 0, z, 0.2 * z)
        logits = jnp.where(adj, z, -1e30)
        alpha = jax.nn.softmax(logits, axis=-1)
        out = alpha @ h + layer['b']
        x = jnp.maximum(out, 0.0) if li < nl - 1 else out
    return _exact_gelu(x)


# ----------------------------------------------------------------------------

if __name__ == "__main__":
    text_features_size = 16
    visual_feature_size = 32
    in_channels = 8          # already even -> feature_size = 8
    hidden_channels = 16
    num_layers = 2
    out_channels = 8

    key = jax.random.PRNGKey(0)
    k_par, k_img, k_txt = jax.random.split(key, 3)

    params = init_params(k_par, text_features_size, visual_feature_size,
                         in_channels, hidden_channels, num_layers, out_channels)
    prep = prepare_params(params)

    n_items = 6
    image_features = jax.random.normal(k_img, (n_items, visual_feature_size), jnp.float32)
    text_features = jax.random.normal(k_txt, (n_items, text_features_size), jnp.float32)
    content_idx_list = [0, 1, 2, 4, 5, 7]                       # 8 graph nodes
    num_nodes = max(content_idx_list) + 1                       # static int, no sync
    content_indices = jnp.array(content_idx_list, jnp.int32)
    edges = jnp.array([[0, 1], [1, 2], [2, 4], [4, 5],
                       [5, 7], [7, 0], [1, 4], [2, 7]], jnp.int32)  # (E, 2) = (src, dst)

    fwd = jax.jit(graph_conv_forward, static_argnames=('num_nodes',))
    out = fwd(prep, image_features, text_features, content_indices, edges,
              num_nodes=num_nodes)
    jax.block_until_ready(out)
    assert out['image_features'].shape == (num_nodes, out_channels)
    assert out['regressed_features'].shape == (num_nodes, out_channels)

    ref = graph_conv_forward_ref(params, image_features, text_features,
                                 content_indices, edges, num_nodes=num_nodes)
    assert jnp.allclose(out['image_features'], ref, atol=5e-2, rtol=5e-2), (
        "kernel output mismatch vs pure-JAX reference")
    print("KERNEL_OK")
</pallas_src>

<mosaic_0001>
module attributes {stable_mosaic.version = 11 : i64} {
  func.func @_fused_forward_kernel(%arg0: memref<6x32xf32, #tpu.memory_space<vmem>>, %arg1: memref<6x16xf32, #tpu.memory_space<vmem>>, %arg2: memref<32x4xbf16, #tpu.memory_space<vmem>>, %arg3: memref<1x4xf32, #tpu.memory_space<vmem>>, %arg4: memref<16x4xbf16, #tpu.memory_space<vmem>>, %arg5: memref<1x4xf32, #tpu.memory_space<vmem>>, %arg6: memref<1x6xi32, #tpu.memory_space<vmem>>, %arg7: memref<1x8xi32, #tpu.memory_space<vmem>>, %arg8: memref<8x1xi32, #tpu.memory_space<vmem>>, %arg9: memref<8x16xbf16, #tpu.memory_space<vmem>>, %arg10: memref<8x2xbf16, #tpu.memory_space<vmem>>, %arg11: memref<1x16xf32, #tpu.memory_space<vmem>>, %arg12: memref<16x8xbf16, #tpu.memory_space<vmem>>, %arg13: memref<16x2xbf16, #tpu.memory_space<vmem>>, %arg14: memref<1x8xf32, #tpu.memory_space<vmem>>, %arg15: memref<8x8xf32, #tpu.memory_space<vmem>>) attributes {dimension_semantics = [], scalar_prefetch = 0 : i64, scratch_operands = 0 : i64, tpu.core_type = #tpu.core_type<tc>} {
    %c0 = arith.constant 0 : index
    %c0_0 = arith.constant 0 : index
    %0 = vector.load %arg0[%c0, %c0_0] : memref<6x32xf32, #tpu.memory_space<vmem>>, vector<6x32xf32>
    %c0_1 = arith.constant 0 : index
    %c0_2 = arith.constant 0 : index
    %1 = vector.load %arg1[%c0_1, %c0_2] : memref<6x16xf32, #tpu.memory_space<vmem>>, vector<6x16xf32>
    %c0_3 = arith.constant 0 : index
    %c0_4 = arith.constant 0 : index
    %2 = vector.load %arg2[%c0_3, %c0_4] : memref<32x4xbf16, #tpu.memory_space<vmem>>, vector<32x4xbf16>
    %c0_5 = arith.constant 0 : index
    %c0_6 = arith.constant 0 : index
    %3 = vector.load %arg3[%c0_5, %c0_6] : memref<1x4xf32, #tpu.memory_space<vmem>>, vector<1x4xf32>
    %c0_7 = arith.constant 0 : index
    %c0_8 = arith.constant 0 : index
    %4 = vector.load %arg4[%c0_7, %c0_8] : memref<16x4xbf16, #tpu.memory_space<vmem>>, vector<16x4xbf16>
    %c0_9 = arith.constant 0 : index
    %c0_10 = arith.constant 0 : index
    %5 = vector.load %arg5[%c0_9, %c0_10] : memref<1x4xf32, #tpu.memory_space<vmem>>, vector<1x4xf32>
    %c0_11 = arith.constant 0 : index
    %c0_12 = arith.constant 0 : index
    %6 = vector.load %arg6[%c0_11, %c0_12] : memref<1x6xi32, #tpu.memory_space<vmem>>, vector<1x6xi32>
    %c0_13 = arith.constant 0 : index
    %c0_14 = arith.constant 0 : index
    %7 = vector.load %arg7[%c0_13, %c0_14] : memref<1x8xi32, #tpu.memory_space<vmem>>, vector<1x8xi32>
    %c0_15 = arith.constant 0 : index
    %c0_16 = arith.constant 0 : index
    %8 = vector.load %arg8[%c0_15, %c0_16] : memref<8x1xi32, #tpu.memory_space<vmem>>, vector<8x1xi32>
    %9 = arith.truncf %0 : vector<6x32xf32> to vector<6x32xbf16>
    %cst = arith.constant dense<0.000000e+00> : vector<6x4xf32>
    %10 = tpu.matmul %9, %2, %cst {dimension_numbers = #tpu.dot_dimension_numbers<[1], [0], [0], [1], [0, 0, 1, 1], [], []>} : vector<6x32xbf16>, vector<32x4xbf16>, vector<6x4xf32> -> vector<6x4xf32>
    %11 = vector.broadcast %3 : vector<1x4xf32> to vector<6x4xf32>
    %12 = arith.addf %10, %11 : vector<6x4xf32>
    %13 = arith.truncf %1 : vector<6x16xf32> to vector<6x16xbf16>
    %cst_17 = arith.constant dense<0.000000e+00> : vector<6x4xf32>
    %14 = tpu.matmul %13, %4, %cst_17 {dimension_numbers = #tpu.dot_dimension_numbers<[1], [0], [0], [1], [0, 0, 1, 1], [], []>} : vector<6x16xbf16>, vector<16x4xbf16>, vector<6x4xf32> -> vector<6x4xf32>
    %15 = vector.broadcast %5 : vector<1x4xf32> to vector<6x4xf32>
    %16 = arith.addf %14, %15 : vector<6x4xf32>
    %17 = tpu.concatenate %12, %16 in 1 : vector<6x4xf32>, vector<6x4xf32> -> vector<6x8xf32>
    %18 = tpu.iota {dimensions = array<i32: 0>} : vector<8x6xi32>
    %19 = vector.broadcast %6 : vector<1x6xi32> to vector<8x6xi32>
    %20 = arith.cmpi eq, %18, %19 : vector<8x6xi32>
    %21 = arith.extui %20 : vector<8x6xi1> to vector<8x6xi32>
    %22 = arith.sitofp %21 : vector<8x6xi32> to vector<8x6xf32>
    %cst_18 = arith.constant dense<0.000000e+00> : vector<8x8xf32>
    %23 = tpu.matmul %22, %17, %cst_18 {dimension_numbers = #tpu.dot_dimension_numbers<[1], [0], [0], [1], [0, 0, 1, 1], [], []>} : vector<8x6xf32>, vector<6x8xf32>, vector<8x8xf32> -> vector<8x8xf32>
    %cst_19 = arith.constant 5.000000e-01 : f32
    %24 = vector.broadcast %cst_19 : f32 to vector<8x8xf32>
    %25 = arith.mulf %24, %23 : vector<8x8xf32>
    %cst_20 = arith.constant 0.707106769 : f32
    %26 = vector.broadcast %cst_20 : f32 to vector<8x8xf32>
    %27 = arith.mulf %23, %26 : vector<8x8xf32>
    %28 = math.erf %27 : vector<8x8xf32>
    %cst_21 = arith.constant 1.000000e+00 : f32
    %29 = vector.broadcast %cst_21 : f32 to vector<8x8xf32>
    %30 = arith.addf %29, %28 : vector<8x8xf32>
    %31 = arith.mulf %25, %30 : vector<8x8xf32>
    %32 = tpu.iota {dimensions = array<i32: 0>} : vector<8x8xi32>
    %33 = vector.broadcast %7 : vector<1x8xi32> to vector<8x8xi32>
    %34 = arith.cmpi eq, %32, %33 : vector<8x8xi32>
    %35 = arith.extui %34 : vector<8x8xi1> to vector<8x8xi32>
    %36 = arith.sitofp %35 : vector<8x8xi32> to vector<8x8xf32>
    %37 = tpu.iota {dimensions = array<i32: 1>} : vector<8x8xi32>
    %38 = vector.broadcast %8 : vector<8x1xi32> to vector<8x8xi32>
    %39 = arith.cmpi eq, %37, %38 : vector<8x8xi32>
    %40 = arith.extui %39 : vector<8x8xi1> to vector<8x8xi32>
    %41 = arith.sitofp %40 : vector<8x8xi32> to vector<8x8xf32>
    %cst_22 = arith.constant dense<0.000000e+00> : vector<8x8xf32>
    %42 = tpu.matmul %36, %41, %cst_22 {dimension_numbers = #tpu.dot_dimension_numbers<[1], [0], [0], [1], [0, 0, 1, 1], [], []>} : vector<8x8xf32>, vector<8x8xf32>, vector<8x8xf32> -> vector<8x8xf32>
    %43 = tpu.iota {dimensions = array<i32: 0>} : vector<8x8xi32>
    %44 = tpu.iota {dimensions = array<i32: 1>} : vector<8x8xi32>
    %45 = arith.cmpi eq, %43, %44 : vector<8x8xi32>
    %cst_23 = arith.constant 0.000000e+00 : f32
    %46 = vector.broadcast %cst_23 : f32 to vector<8x8xf32>
    %47 = arith.cmpf ogt, %42, %46 : vector<8x8xf32>
    %48 = arith.ori %47, %45 : vector<8x8xi1>
    %49 = arith.truncf %31 : vector<8x8xf32> to vector<8x8xbf16>
    %c0_24 = arith.constant 0 : index
    %c0_25 = arith.constant 0 : index
    %50 = vector.load %arg9[%c0_24, %c0_25] : memref<8x16xbf16, #tpu.memory_space<vmem>>, vector<8x16xbf16>
    %cst_26 = arith.constant dense<0.000000e+00> : vector<8x16xf32>
    %51 = tpu.matmul %49, %50, %cst_26 {dimension_numbers = #tpu.dot_dimension_numbers<[1], [0], [0], [1], [0, 0, 1, 1], [], []>} : vector<8x8xbf16>, vector<8x16xbf16>, vector<8x16xf32> -> vector<8x16xf32>
    %c0_27 = arith.constant 0 : index
    %c0_28 = arith.constant 0 : index
    %52 = vector.load %arg10[%c0_27, %c0_28] : memref<8x2xbf16, #tpu.memory_space<vmem>>, vector<8x2xbf16>
    %cst_29 = arith.constant dense<0.000000e+00> : vector<8x2xf32>
    %53 = tpu.matmul %49, %52, %cst_29 {dimension_numbers = #tpu.dot_dimension_numbers<[1], [0], [0], [1], [0, 0, 1, 1], [], []>} : vector<8x8xbf16>, vector<8x2xbf16>, vector<8x2xf32> -> vector<8x2xf32>
    %54 = vector.extract_strided_slice %53 {offsets = [0, 0], sizes = [8, 1], strides = [1, 1]} : vector<8x2xf32> to vector<8x1xf32>
    %55 = vector.extract_strided_slice %53 {offsets = [0, 1], sizes = [8, 1], strides = [1, 1]} : vector<8x2xf32> to vector<8x1xf32>
    %56 = tpu.transpose %55, [1, 0] : vector<8x1xf32> -> vector<1x8xf32>
    %57 = vector.broadcast %54 : vector<8x1xf32> to vector<8x8xf32>
    %58 = vector.broadcast %56 : vector<1x8xf32> to vector<8x8xf32>
    %59 = arith.addf %57, %58 : vector<8x8xf32>
    %cst_30 = arith.constant 0.000000e+00 : f32
    %60 = vector.broadcast %cst_30 : f32 to vector<8x8xf32>
    %61 = arith.cmpf ogt, %59, %60 : vector<8x8xf32>
    %cst_31 = arith.constant 2.000000e-01 : f32
    %62 = vector.broadcast %cst_31 : f32 to vector<8x8xf32>
    %63 = arith.mulf %62, %59 : vector<8x8xf32>
    %64 = arith.select %61, %59, %63 : vector<8x8xi1>, vector<8x8xf32>
    %cst_32 = arith.constant -1.000000e+30 : f32
    %65 = vector.broadcast %cst_32 : f32 to vector<8x8xf32>
    %66 = arith.select %48, %64, %65 : vector<8x8xi1>, vector<8x8xf32>
    %cst_33 = arith.constant dense<0xFF800000> : vector<8xf32>
    %67 = vector.multi_reduction <maximumf>, %66, %cst_33 [1] : vector<8x8xf32> to vector<8xf32>
    %68 = vector.shape_cast %67 : vector<8xf32> to vector<8x1xf32>
    %69 = vector.broadcast %68 : vector<8x1xf32> to vector<8x8xf32>
    %70 = arith.subf %66, %69 : vector<8x8xf32>
    %71 = math.exp %70 : vector<8x8xf32>
    %cst_34 = arith.constant dense<0.000000e+00> : vector<8xf32>
    %72 = vector.multi_reduction <add>, %71, %cst_34 [1] : vector<8x8xf32> to vector<8xf32>
    %73 = vector.shape_cast %72 : vector<8xf32> to vector<8x1xf32>
    %74 = tpu.reciprocal %73 {approx = true} : vector<8x1xf32> -> vector<8x1xf32>
    %75 = vector.broadcast %74 : vector<8x1xf32> to vector<8x8xf32>
    %76 = arith.mulf %71, %75 : vector<8x8xf32>
    %77 = arith.truncf %76 : vector<8x8xf32> to vector<8x8xbf16>
    %78 = arith.truncf %51 : vector<8x16xf32> to vector<8x16xbf16>
    %cst_35 = arith.constant dense<0.000000e+00> : vector<8x16xf32>
    %79 = tpu.matmul %77, %78, %cst_35 {dimension_numbers = #tpu.dot_dimension_numbers<[1], [0], [0], [1], [0, 0, 1, 1], [], []>} : vector<8x8xbf16>, vector<8x16xbf16>, vector<8x16xf32> -> vector<8x16xf32>
    %c0_36 = arith.constant 0 : index
    %c0_37 = arith.constant 0 : index
    %80 = vector.load %arg11[%c0_36, %c0_37] : memref<1x16xf32, #tpu.memory_space<vmem>>, vector<1x16xf32>
    %81 = vector.broadcast %80 : vector<1x16xf32> to vector<8x16xf32>
    %82 = arith.addf %79, %81 : vector<8x16xf32>
    %cst_38 = arith.constant 0.000000e+00 : f32
    %83 = vector.broadcast %cst_38 : f32 to vector<8x16xf32>
    %84 = arith.maximumf %82, %83 : vector<8x16xf32>
    %85 = arith.truncf %84 : vector<8x16xf32> to vector<8x16xbf16>
    %c0_39 = arith.constant 0 : index
    %c0_40 = arith.constant 0 : index
    %86 = vector.load %arg12[%c0_39, %c0_40] : memref<16x8xbf16, #tpu.memory_space<vmem>>, vector<16x8xbf16>
    %cst_41 = arith.constant dense<0.000000e+00> : vector<8x8xf32>
    %87 = tpu.matmul %85, %86, %cst_41 {dimension_numbers = #tpu.dot_dimension_numbers<[1], [0], [0], [1], [0, 0, 1, 1], [], []>} : vector<8x16xbf16>, vector<16x8xbf16>, vector<8x8xf32> -> vector<8x8xf32>
    %c0_42 = arith.constant 0 : index
    %c0_43 = arith.constant 0 : index
    %88 = vector.load %arg13[%c0_42, %c0_43] : memref<16x2xbf16, #tpu.memory_space<vmem>>, vector<16x2xbf16>
    %cst_44 = arith.constant dense<0.000000e+00> : vector<8x2xf32>
    %89 = tpu.matmul %85, %88, %cst_44 {dimension_numbers = #tpu.dot_dimension_numbers<[1], [0], [0], [1], [0, 0, 1, 1], [], []>} : vector<8x16xbf16>, vector<16x2xbf16>, vector<8x2xf32> -> vector<8x2xf32>
    %90 = vector.extract_strided_slice %89 {offsets = [0, 0], sizes = [8, 1], strides = [1, 1]} : vector<8x2xf32> to vector<8x1xf32>
    %91 = vector.extract_strided_slice %89 {offsets = [0, 1], sizes = [8, 1], strides = [1, 1]} : vector<8x2xf32> to vector<8x1xf32>
    %92 = tpu.transpose %91, [1, 0] : vector<8x1xf32> -> vector<1x8xf32>
    %93 = vector.broadcast %90 : vector<8x1xf32> to vector<8x8xf32>
    %94 = vector.broadcast %92 : vector<1x8xf32> to vector<8x8xf32>
    %95 = arith.addf %93, %94 : vector<8x8xf32>
    %cst_45 = arith.constant 0.000000e+00 : f32
    %96 = vector.broadcast %cst_45 : f32 to vector<8x8xf32>
    %97 = arith.cmpf ogt, %95, %96 : vector<8x8xf32>
    %cst_46 = arith.constant 2.000000e-01 : f32
    %98 = vector.broadcast %cst_46 : f32 to vector<8x8xf32>
    %99 = arith.mulf %98, %95 : vector<8x8xf32>
    %100 = arith.select %97, %95, %99 : vector<8x8xi1>, vector<8x8xf32>
    %cst_47 = arith.constant -1.000000e+30 : f32
    %101 = vector.broadcast %cst_47 : f32 to vector<8x8xf32>
    %102 = arith.select %48, %100, %101 : vector<8x8xi1>, vector<8x8xf32>
    %cst_48 = arith.constant dense<0xFF800000> : vector<8xf32>
    %103 = vector.multi_reduction <maximumf>, %102, %cst_48 [1] : vector<8x8xf32> to vector<8xf32>
    %104 = vector.shape_cast %103 : vector<8xf32> to vector<8x1xf32>
    %105 = vector.broadcast %104 : vector<8x1xf32> to vector<8x8xf32>
    %106 = arith.subf %102, %105 : vector<8x8xf32>
    %107 = math.exp %106 : vector<8x8xf32>
    %cst_49 = arith.constant dense<0.000000e+00> : vector<8xf32>
    %108 = vector.multi_reduction <add>, %107, %cst_49 [1] : vector<8x8xf32> to vector<8xf32>
    %109 = vector.shape_cast %108 : vector<8xf32> to vector<8x1xf32>
    %110 = tpu.reciprocal %109 {approx = true} : vector<8x1xf32> -> vector<8x1xf32>
    %111 = vector.broadcast %110 : vector<8x1xf32> to vector<8x8xf32>
    %112 = arith.mulf %107, %111 : vector<8x8xf32>
    %113 = arith.truncf %112 : vector<8x8xf32> to vector<8x8xbf16>
    %114 = arith.truncf %87 : vector<8x8xf32> to vector<8x8xbf16>
    %cst_50 = arith.constant dense<0.000000e+00> : vector<8x8xf32>
    %115 = tpu.matmul %113, %114, %cst_50 {dimension_numbers = #tpu.dot_dimension_numbers<[1], [0], [0], [1], [0, 0, 1, 1], [], []>} : vector<8x8xbf16>, vector<8x8xbf16>, vector<8x8xf32> -> vector<8x8xf32>
    %c0_51 = arith.constant 0 : index
    %c0_52 = arith.constant 0 : index
    %116 = vector.load %arg14[%c0_51, %c0_52] : memref<1x8xf32, #tpu.memory_space<vmem>>, vector<1x8xf32>
    %117 = vector.broadcast %116 : vector<1x8xf32> to vector<8x8xf32>
    %118 = arith.addf %115, %117 : vector<8x8xf32>
    %cst_53 = arith.constant 5.000000e-01 : f32
    %119 = vector.broadcast %cst_53 : f32 to vector<8x8xf32>
    %120 = arith.mulf %119, %118 : vector<8x8xf32>
    %cst_54 = arith.constant 0.707106769 : f32
    %121 = vector.broadcast %cst_54 : f32 to vector<8x8xf32>
    %122 = arith.mulf %118, %121 : vector<8x8xf32>
    %123 = math.erf %122 : vector<8x8xf32>
    %cst_55 = arith.constant 1.000000e+00 : f32
    %124 = vector.broadcast %cst_55 : f32 to vector<8x8xf32>
    %125 = arith.addf %124, %123 : vector<8x8xf32>
    %126 = arith.mulf %120, %125 : vector<8x8xf32>
    %c0_56 = arith.constant 0 : index
    %c0_57 = arith.constant 0 : index
    %127 = vector.load %arg15[%c0_56, %c0_57] : memref<8x8xf32, #tpu.memory_space<vmem>>, vector<8x8xf32>
    tpu.vector_store %arg15[%c0_56, %c0_57], %126 {strides = array<i32>} : memref<8x8xf32, #tpu.memory_space<vmem>>, vector<8x8xf32>,
    return
  }
}

</mosaic_0001>

<llo_original>
// kernel: graph_conv_forward.1
$region0: #{graph_conv_forward.1}
  #allocation0 [shape = 'u32[]', space=smem, size = 0x4, offset = 0x4, fixed_abs, tag = 'smem constant byte address 0x4 - core index']
  #allocation1 [shape = 'u32[72,128]{1,0:T(1,128)}', space=vmem, size = 0x9000, scoped, tag = 'internal scratch']
  %s0 = inlined_call_operand.vmem [shape: f32[6,32], index: 0, kind: input, shape index: {}]
  %s1 = inlined_call_operand.vmem [shape: f32[6,16], index: 1, kind: input, shape index: {}]
  %s2 = inlined_call_operand.vmem [shape: bf16[32,4], index: 2, kind: input, shape index: {}]
  %s3 = inlined_call_operand.vmem [shape: f32[1,4], index: 3, kind: input, shape index: {}]
  %s4 = inlined_call_operand.vmem [shape: bf16[16,4], index: 4, kind: input, shape index: {}]
  %s5 = inlined_call_operand.vmem [shape: f32[1,4], index: 5, kind: input, shape index: {}]
  %s6 = inlined_call_operand.vmem [shape: s32[1,6], index: 6, kind: input, shape index: {}]
  %s7 = inlined_call_operand.vmem [shape: s32[1,8], index: 7, kind: input, shape index: {}]
  %s8 = inlined_call_operand.vmem [shape: s32[8,1], index: 8, kind: input, shape index: {}]
  %s9 = inlined_call_operand.vmem [shape: bf16[8,16], index: 9, kind: input, shape index: {}]
  %s10 = inlined_call_operand.vmem [shape: bf16[8,2], index: 10, kind: input, shape index: {}]
  %s11 = inlined_call_operand.vmem [shape: f32[1,16], index: 11, kind: input, shape index: {}]
  %s12 = inlined_call_operand.vmem [shape: bf16[16,8], index: 12, kind: input, shape index: {}]
  %s13 = inlined_call_operand.vmem [shape: bf16[16,2], index: 13, kind: input, shape index: {}]
  %s14 = inlined_call_operand.vmem [shape: f32[1,8], index: 14, kind: input, shape index: {}]
  %s15 = inlined_call_operand.vmem [shape: f32[8,8], index: 15, kind: output, shape index: {}]
  %s16 = sld [smem:[#allocation0]]
  $region70: #{graph_conv_forward.1} parent=0
    _
  %s18 = ssub.s32 1, %s16
  %s19 = scalar_select 0, %s18, %s16
  // Predicated region
  $region2: #{graph_conv_forward.1} parent=0 // pred_check
    _
  $region3: #{graph_conv_forward.1} parent=0 // pred_check_branch
    %21 = sbr.rel (0) target = $region5
  $region4: #{graph_conv_forward.1} parent=0 // pred_region
    _
  $region5: #{graph_conv_forward.1} parent=0 // pred_fallthru
    _
  // Predicated region
  $region6: #{graph_conv_forward.1} parent=0 // pred_check
    _
  $region7: #{graph_conv_forward.1} parent=0 // pred_check_branch
    %23 = sbr.rel (0) target = $region9
  $region8: #{graph_conv_forward.1} parent=0 // pred_region
    _
  $region9: #{graph_conv_forward.1} parent=0 // pred_fallthru
    _
  // Predicated region
  $region10: #{graph_conv_forward.1} parent=0 // pred_check
    _
  $region11: #{graph_conv_forward.1} parent=0 // pred_check_branch
    %25 = sbr.rel (0) target = $region13
  $region12: #{graph_conv_forward.1} parent=0 // pred_region
    _
  $region13: #{graph_conv_forward.1} parent=0 // pred_fallthru
    _
  // Predicated region
  $region14: #{graph_conv_forward.1} parent=0 // pred_check
    _
  $region15: #{graph_conv_forward.1} parent=0 // pred_check_branch
    %27 = sbr.rel (0) target = $region17
  $region16: #{graph_conv_forward.1} parent=0 // pred_region
    _
  $region17: #{graph_conv_forward.1} parent=0 // pred_fallthru
    _
  // Predicated region
  $region18: #{graph_conv_forward.1} parent=0 // pred_check
    _
  $region19: #{graph_conv_forward.1} parent=0 // pred_check_branch
    %29 = sbr.rel (0) target = $region21
  $region20: #{graph_conv_forward.1} parent=0 // pred_region
    _
  $region21: #{graph_conv_forward.1} parent=0 // pred_fallthru
    _
  // Predicated region
  $region22: #{graph_conv_forward.1} parent=0 // pred_check
    _
  $region23: #{graph_conv_forward.1} parent=0 // pred_check_branch
    %31 = sbr.rel (0) target = $region25
  $region24: #{graph_conv_forward.1} parent=0 // pred_region
    _
  $region25: #{graph_conv_forward.1} parent=0 // pred_fallthru
    _
  // Predicated region
  $region26: #{graph_conv_forward.1} parent=0 // pred_check
    _
  $region27: #{graph_conv_forward.1} parent=0 // pred_check_branch
    %33 = sbr.rel (0) target = $region29
  $region28: #{graph_conv_forward.1} parent=0 // pred_region
    _
  $region29: #{graph_conv_forward.1} parent=0 // pred_fallthru
    _
  // Predicated region
  $region30: #{graph_conv_forward.1} parent=0 // pred_check
    _
  $region31: #{graph_conv_forward.1} parent=0 // pred_check_branch
    %35 = sbr.rel (0) target = $region33
  $region32: #{graph_conv_forward.1} parent=0 // pred_region
    _
  $region33: #{graph_conv_forward.1} parent=0 // pred_fallthru
    _
  // Predicated region
  $region34: #{graph_conv_forward.1} parent=0 // pred_check
    _
  $region35: #{graph_conv_forward.1} parent=0 // pred_check_branch
    %37 = sbr.rel (0) target = $region37
  $region36: #{graph_conv_forward.1} parent=0 // pred_region
    _
  $region37: #{graph_conv_forward.1} parent=0 // pred_fallthru
    _
  // Predicated region
  $region38: #{graph_conv_forward.1} parent=0 // pred_check
    _
  $region39: #{graph_conv_forward.1} parent=0 // pred_check_branch
    %39 = sbr.rel (0) target = $region41
  $region40: #{graph_conv_forward.1} parent=0 // pred_region
    _
  $region41: #{graph_conv_forward.1} parent=0 // pred_fallthru
    _
  // Predicated region
  $region42: #{graph_conv_forward.1} parent=0 // pred_check
    _
  $region43: #{graph_conv_forward.1} parent=0 // pred_check_branch
    %41 = sbr.rel (0) target = $region45
  $region44: #{graph_conv_forward.1} parent=0 // pred_region
    _
  $region45: #{graph_conv_forward.1} parent=0 // pred_fallthru
    _
  // Predicated region
  $region46: #{graph_conv_forward.1} parent=0 // pred_check
    _
  $region47: #{graph_conv_forward.1} parent=0 // pred_check_branch
    %43 = sbr.rel (0) target = $region49
  $region48: #{graph_conv_forward.1} parent=0 // pred_region
    _
  $region49: #{graph_conv_forward.1} parent=0 // pred_fallthru
    _
  // Predicated region
  $region50: #{graph_conv_forward.1} parent=0 // pred_check
    _
  $region51: #{graph_conv_forward.1} parent=0 // pred_check_branch
    %45 = sbr.rel (0) target = $region53
  $region52: #{graph_conv_forward.1} parent=0 // pred_region
    _
  $region53: #{graph_conv_forward.1} parent=0 // pred_fallthru
    _
  // Predicated region
  $region54: #{graph_conv_forward.1} parent=0 // pred_check
    _
  $region55: #{graph_conv_forward.1} parent=0 // pred_check_branch
    %47 = sbr.rel (0) target = $region57
  $region56: #{graph_conv_forward.1} parent=0 // pred_region
    _
  $region57: #{graph_conv_forward.1} parent=0 // pred_fallthru
    _
  // Predicated region
  $region58: #{graph_conv_forward.1} parent=0 // pred_check
    _
  $region59: #{graph_conv_forward.1} parent=0 // pred_check_branch
    %49 = sbr.rel (0) target = $region61
  $region60: #{graph_conv_forward.1} parent=0 // pred_region
    _
  $region61: #{graph_conv_forward.1} parent=0 // pred_fallthru
    _
  %v51 = vld [vmem:[%s0] sm:$0x3f]
  %v52 = vld [vmem:[%s1] sm:$0x3f]
  %v53 = vld [vmem:[%s2] sm:$0xf]
  %v54 = vld [vmem:[%s2 + $0x4] sm:$0xf]
  %v55 = vld [vmem:[%s2 + $0x8] sm:$0xf]
  %v56 = vld [vmem:[%s2 + $0xc] sm:$0xf]
  %v57 = vld [vmem:[%s3] sm:$0x1]
  %v58 = vld [vmem:[%s4] sm:$0xf]
  %v59 = vld [vmem:[%s4 + $0x4] sm:$0xf]
  %v60 = vld [vmem:[%s5] sm:$0x1]
  %v61 = vld [vmem:[%s6] sm:$0x1]
  %v62 = vld [vmem:[%s7] sm:$0x1]
  %v63 = vld [vmem:[%s8] sm:$0xff]
  %v64 = vpack.c.bf16 %v51, %v51
  %v66 = vperm.slane %v57, 0
  %v72 = vunpack.c.l.b16 %v53
  %v73 = vunpack.c.l.b16 %v54
  %v74 = vunpack.c.l.b16 %v55
  %v75 = vunpack.c.l.b16 %v56
  %v76 = vpack.c.b16 %v73, %v72
  %v77 = vpack.c.b16 %v75, %v74
  %vm80 = vcmask 261120
  %v82 = vsel %vm80, %v64, 0
  %84 = vmatpush.bf16.msra.mxu0 0
  %85 = vmatpush.bf16.msra.mxu0 0
  %86 = vmatpush.bf16.msra.mxu0 0
  %87 = vmatpush.bf16.msra.mxu0 0
  %88 = vmatpush.bf16.msra.mxu0 0
  %89 = vmatpush.bf16.msra.mxu0 0
  %90 = vmatpush.bf16.msra.mxu0 %v77
  %91 = vmatpush.bf16.msra.mxu0 %v76
  %92 = vmatmul.bf16.gmra.mxu0 %v82
  %v93 = vpop.f32.mrf.mxu0
  %v94 = vadd.f32 %v66, %v93
  %v95 = vpop.f32.mrf.mxu0
  %96 = vdwg.mxu0
  %v97 = vpack.c.bf16 %v52, %v52
  %v99 = vperm.slane %v60, 0
  %v103 = vunpack.c.l.b16 %v58
  %v104 = vunpack.c.l.b16 %v59
  %v105 = vpack.c.b16 %v104, %v103
  %vm107 = vcmask 130048
  %v109 = vsel %vm107, %v97, 0
  %111 = vmatpush.bf16.msra.mxu0 0
  %112 = vmatpush.bf16.msra.mxu0 0
  %113 = vmatpush.bf16.msra.mxu0 0
  %114 = vmatpush.bf16.msra.mxu0 0
  %115 = vmatpush.bf16.msra.mxu0 0
  %116 = vmatpush.bf16.msra.mxu0 0
  %117 = vmatpush.bf16.msra.mxu0 0
  %118 = vmatpush.bf16.msra.mxu0 %v105
  %119 = vmatmul.bf16.gmra.mxu0 %v109
  %v120 = vpop.f32.mrf.mxu0
  %v121 = vadd.f32 %v99, %v120
  %v122 = vpop.f32.mrf.mxu0
  %123 = vdwg.mxu0
  %125 = vrot.lane.b32.xlu0 %v121, 4
  %v126 = vpop.permute.xlu0 %125
  %vm128 = vcmask 31744
  %v129 = vsel %vm128, %v94, %v126
  %v130 = vlaneseq
  %v131 = vshrl.u32 %v130, 7
  %v132 = vperm.slane %v61, 0
  %vm133 = vcmp.eq.s32.totalorder %v131, %v132
  %v134 = vsel %vm133, 1, 0
  %v135 = vcvt.s32.f32 %v134
  %vm136 = vcmask 48128
  %v138 = vsel %vm136, %v135, 0
  %vm140 = vcmask 1045504
  %v142 = vsel %vm140, %v129, 0
  %144 = vmatpush.msra.mxu0 0.0
  %145 = vmatpush.msra.mxu0 0.0
  %146 = vmatpush.msra.mxu0 0.0
  %147 = vmatpush.msra.mxu0 0.0
  %148 = vmatpush.msra.mxu0 0.0
  %149 = vmatpush.msra.mxu0 0.0
  %150 = vmatpush.msra.mxu0 0.0
  %151 = vmatpush.msra.mxu0 0.0
  %152 = vmatpush.msra.mxu0 0.0
  %153 = vmatpush.msra.mxu0 0.0
  %154 = vmatpush.msra.mxu0 0.0
  %155 = vmatpush.msra.mxu0 0.0
  %156 = vmatpush.msra.mxu0 0.0
  %157 = vmatpush.msra.mxu0 0.0
  %158 = vmatpush.msra.mxu0 0.0
  %159 = vmatpush.msra.mxu0 %v142
  %160 = vmatmul.f32.gmra.mxu0 %v138
  %v161 = vpop.f32.mrf.mxu0
  %v162 = vadd.f32 0.0, %v161
  %163 = vdwg.mxu0
  %v164 = vmul.f32 %v162, 0.5
  %v165 = vmul.f32 %v162, 0.70710677
  %v166 = vmul.f32 %v165, %v165
  %v167 = vmin.f32 16.0, %v166
  %v168 = vmul.f32 %v167, 2.1237322e-06
  %v169 = vadd.f32 %v168, 0.00028619796
  %v170 = vmul.f32 %v167, %v169
  %v171 = vadd.f32 %v170, 0.0036580483
  %v172 = vmul.f32 %v167, %v171
  %v173 = vadd.f32 %v172, 0.05243302
  %v174 = vmul.f32 %v167, %v173
  %v175 = vadd.f32 %v174, 0.18741608
  %v176 = vmul.f32 %v167, %v175
  %v177 = vadd.f32 %v176, 1.1283791
  %v178 = vmul.f32 %v165, %v177
  %v179 = vmul.f32 %v167, 3.8918573e-05
  %v180 = vadd.f32 %v179, 0.001143296
  %v181 = vmul.f32 %v167, %v180
  %v182 = vadd.f32 %v181, 0.014752088
  %v183 = vmul.f32 %v167, %v182
  %v184 = vadd.f32 %v183, 0.112945676
  %v185 = vmul.f32 %v167, %v184
  %v186 = vadd.f32 %v185, 0.4994258
  %v187 = vmul.f32 %v167, %v186
  %v188 = vadd.f32 %v187, 1.0
  %v189 = vrcp.pop %v188
  %v190 = vmul.f32 %v188, %v189
  %v191 = vsub.f32 1.0, %v190
  %v192 = vmul.f32 %v189, %v191
  %v193 = vadd.f32 %v189, %v192
  %vm194 = vweird.f32 %v188
  %vm195 = vweird.f32 %v189
  %vm196 = vmor %vm194, %vm195
  %v197 = vsel %vm196, %v189, %v193
  %v198 = vand.u32 2147483647, %v188
  %vm199 = vcmp.eq.f32.partialorder %v198, 8.507059e+37
  %v200 = vand.u32 %v188, 2147483648
  %v201 = vor.u32 1.1754944e-38, %v200
  %v202 = vsel %vm199, %v201, %v197
  %v203 = vmul.f32 %v178, %v202
  %v204 = vmin.f32 %v203, 1.0
  %v205 = vmax.f32 %v204, -1.0
  %v206 = vadd.f32 %v205, 1.0
  %v207 = vmul.f32 %v164, %v206
  %v208 = vperm.slane %v62, 0
  %vm209 = vcmp.eq.s32.totalorder %v131, %v208
  %v210 = vsel %vm209, 1, 0
  %v211 = vcvt.s32.f32 %v210
  %v212 = vlaneseq
  %v213 = vand.u32 %v212, 127
  %214 = vset.pattern.permute.xlu0 0
  %215 = vperm.xlu0 %214, %v63
  %v216 = vpop.permute.xlu0 %215
  %vm217 = vcmp.eq.s32.totalorder %v213, %v216
  %v218 = vsel %vm217, 1, 0
  %v219 = vcvt.s32.f32 %v218
  %vm220 = vcmask 64512
  %v222 = vsel %vm220, %v211, 0
  %224 = vmatpush.msra.mxu0 0.0
  %225 = vmatpush.msra.mxu0 0.0
  %226 = vmatpush.msra.mxu0 0.0
  %227 = vmatpush.msra.mxu0 0.0
  %228 = vmatpush.msra.mxu0 0.0
  %229 = vmatpush.msra.mxu0 0.0
  %230 = vmatpush.msra.mxu0 0.0
  %231 = vmatpush.msra.mxu0 0.0
  %232 = vmatpush.msra.mxu0 0.0
  %233 = vmatpush.msra.mxu0 0.0
  %234 = vmatpush.msra.mxu0 0.0
  %235 = vmatpush.msra.mxu0 0.0
  %236 = vmatpush.msra.mxu0 0.0
  %237 = vmatpush.msra.mxu0 0.0
  %238 = vmatpush.msra.mxu0 0.0
  %239 = vmatpush.msra.mxu0 %v219
  %240 = vmatmul.f32.gmra.mxu0 %v222
  %v241 = vpop.f32.mrf.mxu0
  %v242 = vadd.f32 0.0, %v241
  %243 = vdwg.mxu0
  %vm244 = vcmp.eq.s32.totalorder %v131, %v213
  %vm245 = vcmp.gt.f32.partialorder %v242, 0.0
  %vm246 = vmor %vm245, %vm244
  %v247 = vpack.c.bf16 %v207, %v207
  %v248 = vld [vmem:[%s9] sm:$0xf]
  %v250 = vsel %vm220, %v247, 0
  %vm252 = vcmask 1043456
  %v254 = vsel %vm252, %v248, 0
  %256 = vmatpush.bf16.msra.mxu0 0
  %257 = vmatpush.bf16.msra.mxu0 0
  %258 = vmatpush.bf16.msra.mxu0 0
  %259 = vmatpush.bf16.msra.mxu0 0
  %260 = vmatpush.bf16.msra.mxu0 0
  %261 = vmatpush.bf16.msra.mxu0 0
  %262 = vmatpush.bf16.msra.mxu0 0
  %263 = vmatpush.bf16.msra.mxu0 %v254
  %264 = vmatmul.bf16.gmra.mxu0 %v250
  %v265 = vpop.f32.mrf.mxu0
  %v266 = vadd.f32 0.0, %v265
  %v267 = vpop.f32.mrf.mxu0
  %268 = vdwg.mxu0
  %v269 = vld [vmem:[%s10] sm:$0xf]
  %v271 = vsel %vm252, %v269, 0
  %273 = vmatpush.bf16.msra.mxu0 0
  %274 = vmatpush.bf16.msra.mxu0 0
  %275 = vmatpush.bf16.msra.mxu0 0
  %276 = vmatpush.bf16.msra.mxu0 0
  %277 = vmatpush.bf16.msra.mxu0 0
  %278 = vmatpush.bf16.msra.mxu0 0
  %279 = vmatpush.bf16.msra.mxu0 0
  %280 = vmatpush.bf16.msra.mxu0 %v271
  %281 = vmatmul.bf16.gmra.mxu0 %v250
  %v282 = vpop.f32.mrf.mxu0
  %v283 = vadd.f32 0.0, %v282
  %v284 = vpop.f32.mrf.mxu0
  %285 = vdwg.mxu0
  %287 = vrot.lane.b32.xlu0 %v283, 127
  %v288 = vpop.permute.xlu0 %287
  %290 = vxpose.xlu0.b32.start [1/16] %v288, 128
  %291 = vxpose.xlu0.b32.cont [2/16] 0.0, 128
  %292 = vxpose.xlu0.b32.cont [3/16] 0.0, 128
  %293 = vxpose.xlu0.b32.cont [4/16] 0.0, 128
  %294 = vxpose.xlu0.b32.cont [5/16] 0.0, 128
  %295 = vxpose.xlu0.b32.cont [6/16] 0.0, 128
  %296 = vxpose.xlu0.b32.cont [7/16] 0.0, 128
  %297 = vxpose.xlu0.b32.cont [8/16] 0.0, 128
  %298 = vxpose.xlu0.b32.cont [9/16] 0.0, 128
  %299 = vxpose.xlu0.b32.cont [10/16] 0.0, 128
  %300 = vxpose.xlu0.b32.cont [11/16] 0.0, 128
  %301 = vxpose.xlu0.b32.cont [12/16] 0.0, 128
  %302 = vxpose.xlu0.b32.cont [13/16] 0.0, 128
  %303 = vxpose.xlu0.b32.cont [14/16] 0.0, 128
  %304 = vxpose.xlu0.b32.cont [15/16] 0.0, 128
  %305 = vxpose.xlu0.b32.end [16/16] 0.0, 128
  %v306 = vpop.trf.xlu0
  %v307 = vpop.trf.xlu0
  %v308 = vpop.trf.xlu0
  %v309 = vpop.trf.xlu0
  %v310 = vpop.trf.xlu0
  %v311 = vpop.trf.xlu0
  %v312 = vpop.trf.xlu0
  %v313 = vpop.trf.xlu0
  %v314 = vpop.trf.xlu0
  %v315 = vpop.trf.xlu0
  %v316 = vpop.trf.xlu0
  %v317 = vpop.trf.xlu0
  %v318 = vpop.trf.xlu0
  %v319 = vpop.trf.xlu0
  %v320 = vpop.trf.xlu0
  %v321 = vpop.trf.xlu0
  %322 = vset.pattern.permute.xlu0 0
  %323 = vperm.xlu0 %322, %v283
  %v324 = vpop.permute.xlu0 %323
  %v326 = vperm.slane %v306, 0
  %v327 = vadd.f32 %v324, %v326
  %vm328 = vcmp.gt.f32.partialorder %v327, 0.0
  %v329 = vmul.f32 %v327, 0.2
  %v330 = vsel %vm328, %v327, %v329
  %v331 = vsel %vm246, %v330, -1e+30
  %v332 = vsel %vm220, %v331, -inf
  %333 = vmax.xlane.f32.xlu0 %v332
  %v334 = vpop.xlane.xlu0 %333
  %v335 = vsub.f32 %v331, %v334
  %v336 = vmul.f32 %v335, 1.442695
  %v337 = vpow.pop %v336
  %v338 = vsel %vm220, %v337, 0.0
  %339 = vadd.xlane.f32.xlu0 %v338
  %v340 = vpop.xlane.xlu0 %339
  %v341 = vrcp.pop %v340
  %v342 = vmul.f32 %v337, %v341
  %v343 = vpack.c.bf16 %v342, %v342
  %v344 = vpack.c.bf16 %v266, %v266
  %v345 = vld [vmem:[%s11] sm:$0x1]
  %v347 = vperm.slane %v345, 0
  %v350 = vsel %vm220, %v343, 0
  %v353 = vsel %vm252, %v344, 0
  %355 = vmatpush.bf16.msra.mxu0 0
  %356 = vmatpush.bf16.msra.mxu0 0
  %357 = vmatpush.bf16.msra.mxu0 0
  %358 = vmatpush.bf16.msra.mxu0 0
  %359 = vmatpush.bf16.msra.mxu0 0
  %360 = vmatpush.bf16.msra.mxu0 0
  %361 = vmatpush.bf16.msra.mxu0 0
  %362 = vmatpush.bf16.msra.mxu0 %v353
  %363 = vmatmul.bf16.gmra.mxu0 %v350
  %v364 = vpop.f32.mrf.mxu0
  %v365 = vadd.f32 %v347, %v364
  %v366 = vpop.f32.mrf.mxu0
  %367 = vdwg.mxu0
  %v368 = vmax.f32 %v365, 0.0
  %v369 = vpack.c.bf16 %v368, %v368
  %v370 = vld [vmem:[%s12] sm:$0xf]
  %v371 = vld [vmem:[%s12 + $0x4] sm:$0xf]
  %v374 = vunpack.c.l.b16 %v370
  %v375 = vunpack.c.l.b16 %v371
  %v376 = vpack.c.b16 %v375, %v374
  %v379 = vsel %vm107, %v369, 0
  %381 = vmatpush.bf16.msra.mxu0 0
  %382 = vmatpush.bf16.msra.mxu0 0
  %383 = vmatpush.bf16.msra.mxu0 0
  %384 = vmatpush.bf16.msra.mxu0 0
  %385 = vmatpush.bf16.msra.mxu0 0
  %386 = vmatpush.bf16.msra.mxu0 0
  %387 = vmatpush.bf16.msra.mxu0 0
  %388 = vmatpush.bf16.msra.mxu0 %v376
  %389 = vmatmul.bf16.gmra.mxu0 %v379
  %v390 = vpop.f32.mrf.mxu0
  %v391 = vadd.f32 0.0, %v390
  %v392 = vpop.f32.mrf.mxu0
  %393 = vdwg.mxu0
  %v394 = vld [vmem:[%s13] sm:$0xf]
  %v395 = vld [vmem:[%s13 + $0x4] sm:$0xf]
  %v398 = vunpack.c.l.b16 %v394
  %v399 = vunpack.c.l.b16 %v395
  %v400 = vpack.c.b16 %v399, %v398
  %402 = vmatpush.bf16.msra.mxu0 0
  %403 = vmatpush.bf16.msra.mxu0 0
  %404 = vmatpush.bf16.msra.mxu0 0
  %405 = vmatpush.bf16.msra.mxu0 0
  %406 = vmatpush.bf16.msra.mxu0 0
  %407 = vmatpush.bf16.msra.mxu0 0
  %408 = vmatpush.bf16.msra.mxu0 0
  %409 = vmatpush.bf16.msra.mxu0 %v400
  %410 = vmatmul.bf16.gmra.mxu0 %v379
  %v411 = vpop.f32.mrf.mxu0
  %v412 = vadd.f32 0.0, %v411
  %v413 = vpop.f32.mrf.mxu0
  %414 = vdwg.mxu0
  %416 = vrot.lane.b32.xlu0 %v412, 127
  %v417 = vpop.permute.xlu0 %416
  %419 = vxpose.xlu0.b32.start [1/16] %v417, 128
  %420 = vxpose.xlu0.b32.cont [2/16] 0.0, 128
  %421 = vxpose.xlu0.b32.cont [3/16] 0.0, 128
  %422 = vxpose.xlu0.b32.cont [4/16] 0.0, 128
  %423 = vxpose.xlu0.b32.cont [5/16] 0.0, 128
  %424 = vxpose.xlu0.b32.cont [6/16] 0.0, 128
  %425 = vxpose.xlu0.b32.cont [7/16] 0.0, 128
  %426 = vxpose.xlu0.b32.cont [8/16] 0.0, 128
  %427 = vxpose.xlu0.b32.cont [9/16] 0.0, 128
  %428 = vxpose.xlu0.b32.cont [10/16] 0.0, 128
  %429 = vxpose.xlu0.b32.cont [11/16] 0.0, 128
  %430 = vxpose.xlu0.b32.cont [12/16] 0.0, 128
  %431 = vxpose.xlu0.b32.cont [13/16] 0.0, 128
  %432 = vxpose.xlu0.b32.cont [14/16] 0.0, 128
  %433 = vxpose.xlu0.b32.cont [15/16] 0.0, 128
  %434 = vxpose.xlu0.b32.end [16/16] 0.0, 128
  %v435 = vpop.trf.xlu0
  %v436 = vpop.trf.xlu0
  %v437 = vpop.trf.xlu0
  %v438 = vpop.trf.xlu0
  %v439 = vpop.trf.xlu0
  %v440 = vpop.trf.xlu0
  %v441 = vpop.trf.xlu0
  %v442 = vpop.trf.xlu0
  %v443 = vpop.trf.xlu0
  %v444 = vpop.trf.xlu0
  %v445 = vpop.trf.xlu0
  %v446 = vpop.trf.xlu0
  %v447 = vpop.trf.xlu0
  %v448 = vpop.trf.xlu0
  %v449 = vpop.trf.xlu0
  %v450 = vpop.trf.xlu0
  %451 = vset.pattern.permute.xlu0 0
  %452 = vperm.xlu0 %451, %v412
  %v453 = vpop.permute.xlu0 %452
  %v455 = vperm.slane %v435, 0
  %v456 = vadd.f32 %v453, %v455
  %vm457 = vcmp.gt.f32.partialorder %v456, 0.0
  %v458 = vmul.f32 %v456, 0.2
  %v459 = vsel %vm457, %v456, %v458
  %v460 = vsel %vm246, %v459, -1e+30
  %v461 = vsel %vm220, %v460, -inf
  %462 = vmax.xlane.f32.xlu0 %v461
  %v463 = vpop.xlane.xlu0 %462
  %v464 = vsub.f32 %v460, %v463
  %v465 = vmul.f32 %v464, 1.442695
  %v466 = vpow.pop %v465
  %v467 = vsel %vm220, %v466, 0.0
  %468 = vadd.xlane.f32.xlu0 %v467
  %v469 = vpop.xlane.xlu0 %468
  %v470 = vrcp.pop %v469
  %v471 = vmul.f32 %v466, %v470
  %v472 = vpack.c.bf16 %v471, %v471
  %v473 = vpack.c.bf16 %v391, %v391
  %v474 = vld [vmem:[%s14] sm:$0x1]
  %v476 = vperm.slane %v474, 0
  %v479 = vsel %vm220, %v472, 0
  %v482 = vsel %vm252, %v473, 0
  %484 = vmatpush.bf16.msra.mxu0 0
  %485 = vmatpush.bf16.msra.mxu0 0
  %486 = vmatpush.bf16.msra.mxu0 0
  %487 = vmatpush.bf16.msra.mxu0 0
  %488 = vmatpush.bf16.msra.mxu0 0
  %489 = vmatpush.bf16.msra.mxu0 0
  %490 = vmatpush.bf16.msra.mxu0 0
  %491 = vmatpush.bf16.msra.mxu0 %v482
  %492 = vmatmul.bf16.gmra.mxu0 %v479
  %v493 = vpop.f32.mrf.mxu0
  %v494 = vadd.f32 %v476, %v493
  %v495 = vpop.f32.mrf.mxu0
  %496 = vdwg.mxu0
  %v497 = vmul.f32 %v494, 0.5
  %v498 = vmul.f32 %v494, 0.70710677
  %v499 = vmul.f32 %v498, %v498
  %v500 = vmin.f32 16.0, %v499
  %v501 = vmul.f32 %v500, 2.1237322e-06
  %v502 = vadd.f32 %v501, 0.00028619796
  %v503 = vmul.f32 %v500, %v502
  %v504 = vadd.f32 %v503, 0.0036580483
  %v505 = vmul.f32 %v500, %v504
  %v506 = vadd.f32 %v505, 0.05243302
  %v507 = vmul.f32 %v500, %v506
  %v508 = vadd.f32 %v507, 0.18741608
  %v509 = vmul.f32 %v500, %v508
  %v510 = vadd.f32 %v509, 1.1283791
  %v511 = vmul.f32 %v498, %v510
  %v512 = vmul.f32 %v500, 3.8918573e-05
  %v513 = vadd.f32 %v512, 0.001143296
  %v514 = vmul.f32 %v500, %v513
  %v515 = vadd.f32 %v514, 0.014752088
  %v516 = vmul.f32 %v500, %v515
  %v517 = vadd.f32 %v516, 0.112945676
  %v518 = vmul.f32 %v500, %v517
  %v519 = vadd.f32 %v518, 0.4994258
  %v520 = vmul.f32 %v500, %v519
  %v521 = vadd.f32 %v520, 1.0
  %v522 = vrcp.pop %v521
  %v523 = vmul.f32 %v521, %v522
  %v524 = vsub.f32 1.0, %v523
  %v525 = vmul.f32 %v522, %v524
  %v526 = vadd.f32 %v522, %v525
  %vm527 = vweird.f32 %v521
  %vm528 = vweird.f32 %v522
  %vm529 = vmor %vm527, %vm528
  %v530 = vsel %vm529, %v522, %v526
  %v531 = vand.u32 2147483647, %v521
  %vm532 = vcmp.eq.f32.partialorder %v531, 8.507059e+37
  %v533 = vand.u32 %v521, 2147483648
  %v534 = vor.u32 1.1754944e-38, %v533
  %v535 = vsel %vm532, %v534, %v530
  %v536 = vmul.f32 %v511, %v535
  %v537 = vmin.f32 %v536, 1.0
  %v538 = vmax.f32 %v537, -1.0
  %v539 = vadd.f32 %v538, 1.0
  %v540 = vmul.f32 %v497, %v539
  %541 = vst.msk [vmem:[%s15] sm:$0xff] %vm220, %v540
  // Predicated region
  $region62: #{graph_conv_forward.1} parent=0 // pred_check
    _
  $region63: #{graph_conv_forward.1} parent=0 // pred_check_branch
    %543 = sbr.rel (0) target = $region65
  $region64: #{graph_conv_forward.1} parent=0 // pred_region
    _
  $region65: #{graph_conv_forward.1} parent=0 // pred_fallthru
    _
  // Predicated region
  $region66: #{graph_conv_forward.1} parent=0 // pred_check
    _
  $region67: #{graph_conv_forward.1} parent=0 // pred_check_branch
    %545 = sbr.rel (0) target = $region69
  $region68: #{graph_conv_forward.1} parent=0 // pred_region
    _
  $region69: #{graph_conv_forward.1} parent=0 // pred_fallthru
    _

</llo_original>
